<compile_context>
chip_gen: v5e
topology: v5e:2x2
jax: 0.10.0
libtpu: 0.0.40
codegen_flags: <defaults>
</compile_context>

<pallas_src>
import functools

import jax
import jax.numpy as jnp
import numpy as np
from jax.experimental import pallas as pl
from jax.experimental.pallas import tpu as pltpu

LANE = 128


def _round_up(x, m):
    return (x + m - 1) // m * m


# ----------------------------------------------------------------------------
# Pallas kernel: phoneme_proj_con + folded linear heads, both from the same x.
# ----------------------------------------------------------------------------
def _proj_heads_kernel(x_ref, wp_ref, we_ref, be_ref, oph_ref, oheads_ref):
    x = x_ref[...].astype(jnp.bfloat16)                               # (tm, 256), cast in-kernel
    # phoneme_proj_con (Conv1d 256->256, k=1, no bias)
    oph_ref[...] = jnp.dot(x, wp_ref[...],
                           preferred_element_type=jnp.float32).astype(oph_ref.dtype)
    # all heads folded through the conv: x @ (Wp @ [W_mda|W_cmel|W_mel]) + b
    h = jnp.dot(x, we_ref[...], preferred_element_type=jnp.float32) + be_ref[...]
    oheads_ref[...] = h.astype(oheads_ref.dtype)


# ----------------------------------------------------------------------------
# Wrapper: weight folding, lane-aligned head slots, big M tiles, megacore grid.
# ----------------------------------------------------------------------------
def proj_and_heads(pe_btc, w_proj, heads, *, tile_m=2048):
    """phoneme_proj_con + all per-timestep linear heads in one pallas_call.

    pe_btc : (B, T, 256) f32 phoneme-encoder output.
    w_proj : (256, 256)  phoneme_proj_con weight stored (in, out).
    heads  : list of (w (256, Ni), b (Ni,) or None); each head is folded
             through w_proj (W_eff = Wp @ W) and gets its own 128-lane-aligned
             slot in the output slab (lane-aligned split afterwards).
    Returns (output_phoneme (B,T,256) bf16, heads_src (B,T,Np) bf16, slots).
    """
    B, T, K = pe_btc.shape
    M = B * T

    w_cols, b_cols, slots, off = [], [], [], 0
    for w, b in heads:
        n = w.shape[1]
        npad = _round_up(n, LANE)
        w_eff = jnp.dot(w_proj.astype(jnp.float32), w.astype(jnp.float32),
                        precision=jax.lax.Precision.HIGHEST)           # fold 1x1 conv
        w_cols.append(jnp.pad(w_eff, ((0, 0), (0, npad - n))))
        b_i = b if b is not None else jnp.zeros((n,), jnp.float32)
        b_cols.append(jnp.pad(b_i.astype(jnp.float32), (0, npad - n)))
        slots.append((off, n))
        off += npad
    Np = off
    w_eff = jnp.concatenate(w_cols, axis=1).astype(jnp.bfloat16)        # (256, Np)
    b_eff = jnp.concatenate(b_cols, axis=0).reshape(1, Np)              # (1, Np) f32

    wp = w_proj.astype(jnp.bfloat16)
    x2d = pe_btc.reshape(M, K)          # stays f32; cast happens inside the kernel

    # Big tiles, but keep >= 2 grid steps so the M axis can megacore-shard (v7x).
    tm = max(16, min(tile_m, _round_up(pl.cdiv(M, 2), 16)))
    grid = (pl.cdiv(M, tm),)

    oph, oheads = pl.pallas_call(
        _proj_heads_kernel,
        out_shape=(jax.ShapeDtypeStruct((M, K), jnp.bfloat16),
                   jax.ShapeDtypeStruct((M, Np), jnp.bfloat16)),
        grid_spec=pltpu.PrefetchScalarGridSpec(
            num_scalar_prefetch=0,
            grid=grid,
            in_specs=[pl.BlockSpec((tm, K), lambda i: (i, 0)),
                      pl.BlockSpec((K, K), lambda i: (0, 0)),
                      pl.BlockSpec((K, Np), lambda i: (0, 0)),
                      pl.BlockSpec((1, Np), lambda i: (0, 0))],
            out_specs=[pl.BlockSpec((tm, K), lambda i: (i, 0)),
                       pl.BlockSpec((tm, Np), lambda i: (i, 0))]),
        compiler_params=pltpu.CompilerParams(
            dimension_semantics=("parallel",),
            vmem_limit_bytes=32 * 1024 * 1024),
    )(x2d, wp, w_eff, b_eff)

    return oph.reshape(B, T, K), oheads.reshape(B, T, Np), slots


# ----------------------------------------------------------------------------
# Plain-JAX glue: masks + LengthRegulator index computation (searchsorted).
# ----------------------------------------------------------------------------
def get_mask_from_lengths(lengths, max_len):
    ids = jnp.arange(max_len, dtype=lengths.dtype)
    return ids[None, :] >= lengths[:, None]          # True at padded positions


def length_regulator_indices(durations_bt, max_len):
    """Source-row index for each expanded mel frame + validity mask.

    Uses a vmapped searchsorted instead of a (B, max_len, T) broadcast compare.
    """
    T = durations_bt.shape[1]
    cum = jnp.cumsum(durations_bt.astype(jnp.int32), axis=1)            # (B, T)
    mel_lens = cum[:, -1]                                               # (B,)
    pos = jnp.arange(max_len, dtype=jnp.int32)
    idx = jax.vmap(lambda c: jnp.searchsorted(c, pos, side="right"))(cum)
    idx = jnp.minimum(idx, T - 1).astype(jnp.int32)                     # (B, max_len)
    valid = pos[None, :] < mel_lens[:, None]
    return idx, valid, mel_lens


# ----------------------------------------------------------------------------
# Speaker2Dubber forward (pretrain path).
# ----------------------------------------------------------------------------
def speaker2dubber_forward(params, phoneme_embeddings, d_targets, src_lens,
                           *, max_src_len, max_mel_len):
    # TODO(synk): self.phoneme_encoder (Transformer Encoder) not provided; the
    #             kernel consumes its output `phoneme_embeddings` directly.
    # TODO(synk): lip path / Duration Consistency Reasoning branch skipped
    #             (train_mode == 'pretrain').
    src_masks = get_mask_from_lengths(src_lens, max_src_len)

    # phoneme_proj_con + CTC_classifier_MDA + CTC_classifier_mel + mel_linear,
    # all in ONE pallas_call over source frames (heads folded through the conv).
    # TODO(synk): CTC_classifier_MDA definition not provided; assumed identical
    #             structure to CTC_classifier_mel (Linear 256 -> num_classes).
    output_phoneme, heads_src, slots = proj_and_heads(
        phoneme_embeddings, params["w_proj_con"],
        [(params["w_ctc_mda"], params["b_ctc_mda"]),
         (params["w_ctc_mel"], params["b_ctc_mel"]),
         (params["w_mel"], params["b_mel"])])

    # TODO(synk): PCL (Prosody_Consistency_Learning) not provided -> identity;
    #             its pitch / energy predictions are zero placeholders.
    p_predictions = jnp.zeros(output_phoneme.shape[:2], jnp.float32)
    e_predictions = jnp.zeros(output_phoneme.shape[:2], jnp.float32)

    # pretrain branch: durations come from ground truth.
    d_predictions = d_targets

    # LengthRegulator: one shared row gather of the narrow head slab (the
    # 256-wide prosody activation never touches HBM).  Padded frames are
    # don't-care in the original module (masked at the loss); we zero them.
    idx, valid, mel_lens = length_regulator_indices(d_targets, max_mel_len)
    mel_masks = get_mask_from_lengths(mel_lens, max_mel_len)
    gathered = jnp.take_along_axis(heads_src, idx[..., None], axis=1)   # (B, max_mel, Np)
    gathered = jnp.where(valid[..., None], gathered.astype(jnp.float32), 0.0)

    (o_mda, n_mda), (o_cmel, n_cmel), (o_mel, n_mel_c) = slots
    ctc_pred_MDA_video = gathered[:, :, o_mda:o_mda + n_mda]
    ctc_pred_mel = gathered[:, :, o_cmel:o_cmel + n_cmel]
    fusion_output = gathered[:, :, o_mel:o_mel + n_mel_c]

    # TODO(synk): self.decoder (Transformer Decoder) not provided -> identity
    #             (hence the heads could be folded before the gather above).
    # TODO(synk): PostNet (5x Conv1d k=5) not provided -> identity residual.
    postnet_output = fusion_output

    ctc_loss_all = (ctc_pred_MDA_video, ctc_pred_mel)
    return (fusion_output, postnet_output, p_predictions, e_predictions,
            d_predictions, src_masks, mel_masks, src_lens, mel_lens,
            ctc_loss_all, max_src_len)


# ----------------------------------------------------------------------------
# Pure-f32 reference following the module structure (no weight folding).
# ----------------------------------------------------------------------------
def reference_forward(params, pe, d_targets, max_mel_len):
    op = pe @ params["w_proj_con"]                                     # phoneme_proj_con
    ctc_mda = op @ params["w_ctc_mda"] + params["b_ctc_mda"]           # CTC_classifier_MDA
    idx, valid, _ = length_regulator_indices(d_targets, max_mel_len)

    def expand(x):   # LengthRegulator: repeat row t d[b,t] times, zero-pad
        g = jnp.take_along_axis(x, idx[..., None], axis=1)
        return jnp.where(valid[..., None], g, 0.0)

    prosody = expand(op)                       # PCL / decoder identity (TODO)
    ctc_mda_e = expand(ctc_mda)
    ctc_mel = prosody @ params["w_ctc_mel"] + params["b_ctc_mel"]
    mel = prosody @ params["w_mel"] + params["b_mel"]
    # Padded frames are don't-care (masked at the loss); zero them so they
    # compare against the kernel path, which masks after the commuted heads.
    ctc_mel = jnp.where(valid[..., None], ctc_mel, 0.0)
    mel = jnp.where(valid[..., None], mel, 0.0)
    return op, mel, ctc_mda_e, ctc_mel


# ----------------------------------------------------------------------------
# Deterministic parameter init + driver.
# ----------------------------------------------------------------------------
def init_params(key, hidden=256, num_classes=40, n_mel=80):
    ks = jax.random.split(key, 4)
    s = 0.02
    return {
        # Conv1d(256,256,1,bias=False) weight, stored as (in, out)
        "w_proj_con": s * jax.random.normal(ks[0], (hidden, hidden), jnp.float32),
        # CTC_classifier_MDA: Linear(256, num_classes)
        "w_ctc_mda": s * jax.random.normal(ks[1], (hidden, num_classes), jnp.float32),
        "b_ctc_mda": jnp.zeros((num_classes,), jnp.float32),
        # CTC_classifier_mel: Linear(256, num_classes)
        "w_ctc_mel": s * jax.random.normal(ks[2], (hidden, num_classes), jnp.float32),
        "b_ctc_mel": jnp.zeros((num_classes,), jnp.float32),
        # mel_linear: Linear(decoder_hidden=256, n_mel_channels=80)
        "w_mel": s * jax.random.normal(ks[3], (hidden, n_mel), jnp.float32),
        "b_mel": jnp.zeros((n_mel,), jnp.float32),
    }


if __name__ == "__main__":
    key = jax.random.PRNGKey(0)
    k_in, k_par = jax.random.split(key)

    B, T_src, H = 2, 16, 256         # hidden = 256 is fixed by the module
    num_classes, n_mel = 40, 80
    max_src_len = T_src
    max_mel_len = 40                 # static upper bound on expanded length

    # Synthetic phoneme-encoder output and ground-truth durations (pretrain).
    phoneme_embeddings = jax.random.normal(k_in, (B, T_src, H), jnp.float32)
    d_targets = (1 + jnp.arange(B * T_src, dtype=jnp.int32) % 3).reshape(B, T_src)
    src_lens = jnp.full((B,), T_src, jnp.int32)

    params = init_params(k_par, hidden=H, num_classes=num_classes, n_mel=n_mel)

    fwd = jax.jit(functools.partial(speaker2dubber_forward, params,
                                    max_src_len=max_src_len,
                                    max_mel_len=max_mel_len))
    outs = jax.block_until_ready(fwd(phoneme_embeddings, d_targets, src_lens))

    (fusion_output, postnet_output, p_pred, e_pred, d_pred,
     src_masks, mel_masks, src_lens_o, mel_lens,
     (ctc_mda, ctc_mel), _) = outs

    assert fusion_output.shape == (B, max_mel_len, n_mel)
    assert postnet_output.shape == (B, max_mel_len, n_mel)
    assert ctc_mda.shape == (B, max_mel_len, num_classes)
    assert ctc_mel.shape == (B, max_mel_len, num_classes)
    assert mel_masks.shape == (B, max_mel_len)
    assert p_pred.shape == (B, T_src) and e_pred.shape == (B, T_src)

    # Numerical check against the pure-f32 reference (bf16 MXU inputs and
    # folded Wp@W heads -> loose tolerance).
    ref_op, ref_mel, ref_mda, ref_cmel = reference_forward(
        params, phoneme_embeddings, d_targets, max_mel_len)
    np.testing.assert_allclose(np.asarray(fusion_output), np.asarray(ref_mel),
                               rtol=5e-2, atol=5e-2)
    np.testing.assert_allclose(np.asarray(ctc_mda), np.asarray(ref_mda),
                               rtol=5e-2, atol=5e-2)
    np.testing.assert_allclose(np.asarray(ctc_mel), np.asarray(ref_cmel),
                               rtol=5e-2, atol=5e-2)

    # Also check the phoneme_proj_con output path of the kernel.
    op_k, _, _ = proj_and_heads(
        phoneme_embeddings, params["w_proj_con"],
        [(params["w_ctc_mda"], params["b_ctc_mda"]),
         (params["w_ctc_mel"], params["b_ctc_mel"]),
         (params["w_mel"], params["b_mel"])])
    np.testing.assert_allclose(np.asarray(op_k.astype(jnp.float32)),
                               np.asarray(ref_op), rtol=5e-2, atol=5e-2)

    print("KERNEL_OK")
</pallas_src>

<mosaic_0001>
module attributes {stable_mosaic.version = 11 : i64} {
  func.func @_proj_heads_kernel(%arg0: i32, %arg1: memref<16x256xf32, #tpu.memory_space<vmem>>, %arg2: memref<256x256xbf16, #tpu.memory_space<vmem>>, %arg3: memref<256x384xbf16, #tpu.memory_space<vmem>>, %arg4: memref<1x384xf32, #tpu.memory_space<vmem>>, %arg5: memref<16x256xbf16, #tpu.memory_space<vmem>>, %arg6: memref<16x384xbf16, #tpu.memory_space<vmem>>) attributes {dimension_semantics = [#tpu.dimension_semantics<parallel>], iteration_bounds = array<i64: 2>, scalar_prefetch = 0 : i64, scratch_operands = 0 : i64, tpu.core_type = #tpu.core_type<tc>, window_params = [{transform_indices = @transform_0, window_bounds = array<i64: 16, 256>}, {pipeline_mode = #tpu.pipeline_mode<synchronous>, transform_indices = @transform_1, window_bounds = array<i64: 256, 256>}, {pipeline_mode = #tpu.pipeline_mode<synchronous>, transform_indices = @transform_2, window_bounds = array<i64: 256, 384>}, {pipeline_mode = #tpu.pipeline_mode<synchronous>, transform_indices = @transform_3, window_bounds = array<i64: 1, 384>}, {transform_indices = @transform_4, window_bounds = array<i64: 16, 256>}, {transform_indices = @transform_5, window_bounds = array<i64: 16, 384>}]} {
    %c0 = arith.constant 0 : index
    %c0_0 = arith.constant 0 : index
    %0 = vector.load %arg1[%c0, %c0_0] : memref<16x256xf32, #tpu.memory_space<vmem>>, vector<16x256xf32>
    %1 = arith.truncf %0 : vector<16x256xf32> to vector<16x256xbf16>
    %c0_1 = arith.constant 0 : index
    %c0_2 = arith.constant 0 : index
    %2 = vector.load %arg2[%c0_1, %c0_2] : memref<256x256xbf16, #tpu.memory_space<vmem>>, vector<256x256xbf16>
    %cst = arith.constant dense<0.000000e+00> : vector<16x256xf32>
    %3 = tpu.matmul %1, %2, %cst {dimension_numbers = #tpu.dot_dimension_numbers<[1], [0], [0], [1], [0, 0, 1, 1], [], []>} : vector<16x256xbf16>, vector<256x256xbf16>, vector<16x256xf32> -> vector<16x256xf32>
    %4 = arith.truncf %3 : vector<16x256xf32> to vector<16x256xbf16>
    %c0_3 = arith.constant 0 : index
    %c0_4 = arith.constant 0 : index
    %5 = vector.load %arg5[%c0_3, %c0_4] : memref<16x256xbf16, #tpu.memory_space<vmem>>, vector<16x256xbf16>
    tpu.vector_store %arg5[%c0_3, %c0_4], %4 {strides = array<i32>} : memref<16x256xbf16, #tpu.memory_space<vmem>>, vector<16x256xbf16>,
    %c0_5 = arith.constant 0 : index
    %c0_6 = arith.constant 0 : index
    %6 = vector.load %arg3[%c0_5, %c0_6] : memref<256x384xbf16, #tpu.memory_space<vmem>>, vector<256x384xbf16>
    %cst_7 = arith.constant dense<0.000000e+00> : vector<16x384xf32>
    %7 = tpu.matmul %1, %6, %cst_7 {dimension_numbers = #tpu.dot_dimension_numbers<[1], [0], [0], [1], [0, 0, 1, 1], [], []>} : vector<16x256xbf16>, vector<256x384xbf16>, vector<16x384xf32> -> vector<16x384xf32>
    %c0_8 = arith.constant 0 : index
    %c0_9 = arith.constant 0 : index
    %8 = vector.load %arg4[%c0_8, %c0_9] : memref<1x384xf32, #tpu.memory_space<vmem>>, vector<1x384xf32>
    %9 = vector.broadcast %8 : vector<1x384xf32> to vector<16x384xf32>
    %10 = arith.addf %7, %9 : vector<16x384xf32>
    %11 = arith.truncf %10 : vector<16x384xf32> to vector<16x384xbf16>
    %c0_10 = arith.constant 0 : index
    %c0_11 = arith.constant 0 : index
    %12 = vector.load %arg6[%c0_10, %c0_11] : memref<16x384xbf16, #tpu.memory_space<vmem>>, vector<16x384xbf16>
    tpu.vector_store %arg6[%c0_10, %c0_11], %11 {strides = array<i32>} : memref<16x384xbf16, #tpu.memory_space<vmem>>, vector<16x384xbf16>,
    return
  }
  func.func @transform_0(%arg0: i32) -> (i32, i32) {
    %c0_i32 = arith.constant 0 : i32
    %c0_i32_0 = arith.constant 0 : i32
    return %arg0, %c0_i32 : i32, i32
  }
  func.func @transform_1(%arg0: i32) -> (i32, i32) {
    %c0_i32 = arith.constant 0 : i32
    %c0_i32_0 = arith.constant 0 : i32
    %c0_i32_1 = arith.constant 0 : i32
    return %c0_i32, %c0_i32_0 : i32, i32
  }
  func.func @transform_2(%arg0: i32) -> (i32, i32) {
    %c0_i32 = arith.constant 0 : i32
    %c0_i32_0 = arith.constant 0 : i32
    %c0_i32_1 = arith.constant 0 : i32
    return %c0_i32, %c0_i32_0 : i32, i32
  }
  func.func @transform_3(%arg0: i32) -> (i32, i32) {
    %c0_i32 = arith.constant 0 : i32
    %c0_i32_0 = arith.constant 0 : i32
    %c0_i32_1 = arith.constant 0 : i32
    return %c0_i32, %c0_i32_0 : i32, i32
  }
  func.func @transform_4(%arg0: i32) -> (i32, i32) {
    %c0_i32 = arith.constant 0 : i32
    %c0_i32_0 = arith.constant 0 : i32
    return %arg0, %c0_i32 : i32, i32
  }
  func.func @transform_5(%arg0: i32) -> (i32, i32) {
    %c0_i32 = arith.constant 0 : i32
    %c0_i32_0 = arith.constant 0 : i32
    return %arg0, %c0_i32 : i32, i32
  }
}

</mosaic_0001>

<llo_original>
// kernel: custom-call.4
$region0: #{custom-call.4}
  %s0 = inlined_call_operand.vmem [shape: u32[2,40], index: 0, kind: output, shape index: {}]

// kernel: squeeze.8
$region0: #{squeeze.8}
  %s0 = inlined_call_operand.vmem [shape: s32[80], index: 0, kind: input, shape index: {}]
  %s1 = inlined_call_operand.vmem [shape: s32[2,40], index: 1, kind: output, shape index: {}]
  $region1: #{squeeze.8} parent=0
    #allocation0 [shape = 'u8[4096]{0}', space=vmem, size = 0x1000, scoped, tag = 'scoped mem for output reshape']
    #allocation1 [shape = 'u8[4096]{0}', space=vmem, size = 0x1000, scoped, tag = 'scoped mem for input reshape']
    %s3 = ssub.s32 2, 1
    %v4 = vld [vmem:[%s0] sm:%s3]
    %5 = vst [vmem:[#allocation1] sm:%s3] %v4
    %v6 = vld [vmem:[#allocation1] sm:$0x1]
    %vm7 = vcmask 326656
    %8 = vst.msk [vmem:[#allocation0] sm:$0x1] %vm7, %v6
    %v9 = vld [vmem:[#allocation1] sm:$0x1]
    %10 = vrot.lane.b32.xlu0 %v9, 88
    %v11 = vpop.permute.xlu0 %10
    %vm12 = vcmask 326656
    %s13 = scalar_lea.vmem [#allocation0], 1
    %14 = vst.msk [vmem:[%s13] sm:$0x1] %vm12, %v11
    %s16 = ssub.s32 4, 1
    %v17 = vld [vmem:[#allocation0] sm:%s16]
    %s19 = ssub.s32 4, 1
    %20 = vst [vmem:[%s1] sm:%s19] %v17

// kernel: speaker2dubber_forward.1
$region0: #{speaker2dubber_forward.1}
  #allocation0 [shape = 'u32[]', space=smem, size = 0x4, offset = 0x4, fixed_abs, tag = 'smem constant byte address 0x4 - core index']
  #allocation1 [shape = 'u32[72,128]{1,0:T(1,128)}', space=vmem, size = 0x9000, scoped, tag = 'internal scratch']
  %s0 = inlined_call_operand.vmem [shape: f32[32,256], index: 0, kind: input, shape index: {}]
  %s1 = inlined_call_operand.vmem [shape: bf16[256,256], index: 1, kind: input, shape index: {}]
  %s2 = inlined_call_operand.vmem [shape: bf16[256,384], index: 2, kind: input, shape index: {}]
  %s3 = inlined_call_operand.vmem [shape: f32[1,384], index: 3, kind: input, shape index: {}]
  %s4 = inlined_call_operand.hbm [shape: bf16[32,256], index: 4, kind: output, shape index: {0}]
  %s5 = inlined_call_operand.vmem [shape: bf16[32,384], index: 5, kind: output, shape index: {1}]
  %6 = xla_tuple %s4, %s5
  %s7 = sld [smem:[#allocation0]]
  $region57: #{speaker2dubber_forward.1} parent=0
    _
  %s9 = ssub.s32 1, %s7
  %s10 = scalar_select 0, %s9, %s7
  $region1: #{speaker2dubber_forward.1} parent=0
    #allocation2 [shape = 'u8[16384]{0}', space=vmem, size = 0x4000, scoped, tag = 'output window, operand 0']
    #allocation3 [shape = 's32[2]{0}', space=sflag, size = 0x8, scoped, tag = 'scoped memory for speaker2dubber_forward.1']
    %11 = vsyncpa [#allocation3], 0
    %s12 = scalar_lea.sflag [#allocation3], 1
    %13 = vsyncpa %s12, 0
    loop: start=0, step=1, limit=4
    $region2: #{speaker2dubber_forward.1} parent=1 // loop_pre_header
      _
    $region3: #{speaker2dubber_forward.1} parent=1 // loop_header
      %s15 = sphi 0, %s19
      %p16 = scmp.ge.s32.totalorder %s15, 4
      %s25 = sphi 0, %s27
      %s28 = sphi 0, %s25
      %s29 = sphi 0, %s28
      %s45 = sphi 0, %s29
      %s49 = sphi 0, %s49
      %s51 = sphi 0, %s49
      %s52 = sphi 0, %s51
      %s66 = sphi 0, %s52
      %s70 = sphi 0, %s70
      %s72 = sphi 0, %s70
      %s73 = sphi 0, %s72
      %s87 = sphi 0, %s73
      %s91 = sphi 0, %s91
      %s93 = sphi 0, %s91
      %s94 = sphi 0, %s93
      %s108 = sphi 0, %s94
      %s114 = sphi 0, %s116
      %s117 = sphi 0, %s114
      %s118 = sphi 0, %s117
      %s134 = sphi 0, %s118
      %s140 = sphi 0, %s142
      %s143 = sphi 0, %s140
      %s144 = sphi 0, %s143
      %s160 = sphi 0, %s144
    $region4: #{speaker2dubber_forward.1} parent=1 // loop_header_branch
      %18 = sbr.rel (%p16) target = $region8
    $region5: #{speaker2dubber_forward.1} parent=1 // loop_body
      %s20 = ssub.s32 %s15, 1
      %s21 = ssub.s32 %s15, 2
      %s22 = sadd.s32 %s15, 1
      %s23 = ssub.s32 %s15, %s22
      %p24 = scmp.eq.s32.totalorder %s23, 0
      %s26 = sadd.s32 %s25, 1
      %s27 = scalar_select %p24, %s25, %s26
      %p30 = pneg %p24
      %p31 = scmp.eq.s32.totalorder %s15, 1
      %p32 = por %p30, %p31
      %p33 = scmp.ne.s32.totalorder %s25, %s28
      %p34 = scmp.eq.s32.totalorder %s15, 0
      %p35 = por %p33, %p34
      %p36 = scmp.ne.s32.totalorder %s25, %s28
      %p37 = scmp.eq.s32.totalorder %s20, 1
      %p38 = por %p36, %p37
      %p39 = scmp.ne.s32.totalorder %s28, %s29
      %p40 = scmp.eq.s32.totalorder %s20, 0
      %p41 = por %p39, %p40
      %p42 = scmp.ne.s32.totalorder %s28, %s29
      %p43 = scmp.eq.s32.totalorder %s21, 1
      %p44 = por %p42, %p43
      %p46 = scmp.ne.s32.totalorder %s29, %s45
      %p47 = scmp.eq.s32.totalorder %s21, 0
      %p48 = por %p46, %p47
      %s50 = sadd.s32 %s49, 1
      %p53 = scmp.eq.s32.totalorder %s15, 1
      %p54 = scmp.ne.s32.totalorder %s49, %s51
      %p55 = scmp.eq.s32.totalorder %s15, 0
      %p56 = por %p54, %p55
      %p57 = scmp.ne.s32.totalorder %s49, %s51
      %p58 = scmp.eq.s32.totalorder %s20, 1
      %p59 = por %p57, %p58
      %p60 = scmp.ne.s32.totalorder %s51, %s52
      %p61 = scmp.eq.s32.totalorder %s20, 0
      %p62 = por %p60, %p61
      %p63 = scmp.ne.s32.totalorder %s51, %s52
      %p64 = scmp.eq.s32.totalorder %s21, 1
      %p65 = por %p63, %p64
      %p67 = scmp.ne.s32.totalorder %s52, %s66
      %p68 = scmp.eq.s32.totalorder %s21, 0
      %p69 = por %p67, %p68
      %s71 = sadd.s32 %s70, 1
      %p74 = scmp.eq.s32.totalorder %s15, 1
      %p75 = scmp.ne.s32.totalorder %s70, %s72
      %p76 = scmp.eq.s32.totalorder %s15, 0
      %p77 = por %p75, %p76
      %p78 = scmp.ne.s32.totalorder %s70, %s72
      %p79 = scmp.eq.s32.totalorder %s20, 1
      %p80 = por %p78, %p79
      %p81 = scmp.ne.s32.totalorder %s72, %s73
      %p82 = scmp.eq.s32.totalorder %s20, 0
      %p83 = por %p81, %p82
      %p84 = scmp.ne.s32.totalorder %s72, %s73
      %p85 = scmp.eq.s32.totalorder %s21, 1
      %p86 = por %p84, %p85
      %p88 = scmp.ne.s32.totalorder %s73, %s87
      %p89 = scmp.eq.s32.totalorder %s21, 0
      %p90 = por %p88, %p89
      %s92 = sadd.s32 %s91, 1
      %p95 = scmp.eq.s32.totalorder %s15, 1
      %p96 = scmp.ne.s32.totalorder %s91, %s93
      %p97 = scmp.eq.s32.totalorder %s15, 0
      %p98 = por %p96, %p97
      %p99 = scmp.ne.s32.totalorder %s91, %s93
      %p100 = scmp.eq.s32.totalorder %s20, 1
      %p101 = por %p99, %p100
      %p102 = scmp.ne.s32.totalorder %s93, %s94
      %p103 = scmp.eq.s32.totalorder %s20, 0
      %p104 = por %p102, %p103
      %p105 = scmp.ne.s32.totalorder %s93, %s94
      %p106 = scmp.eq.s32.totalorder %s21, 1
      %p107 = por %p105, %p106
      %p109 = scmp.ne.s32.totalorder %s94, %s108
      %p110 = scmp.eq.s32.totalorder %s21, 0
      %p111 = por %p109, %p110
      %s112 = ssub.s32 %s15, %s22
      %p113 = scmp.eq.s32.totalorder %s112, 0
      %s115 = sadd.s32 %s114, 1
      %s116 = scalar_select %p113, %s114, %s115
      %p119 = pneg %p113
      %p120 = scmp.eq.s32.totalorder %s15, 1
      %p121 = por %p119, %p120
      %p122 = scmp.ne.s32.totalorder %s114, %s117
      %p123 = scmp.eq.s32.totalorder %s15, 0
      %p124 = por %p122, %p123
      %p125 = scmp.ne.s32.totalorder %s114, %s117
      %p126 = scmp.eq.s32.totalorder %s20, 1
      %p127 = por %p125, %p126
      %p128 = scmp.ne.s32.totalorder %s117, %s118
      %p129 = scmp.eq.s32.totalorder %s20, 0
      %p130 = por %p128, %p129
      %p131 = scmp.ne.s32.totalorder %s117, %s118
      %p132 = scmp.eq.s32.totalorder %s21, 1
      %p133 = por %p131, %p132
      %p135 = scmp.ne.s32.totalorder %s118, %s134
      %p136 = scmp.eq.s32.totalorder %s21, 0
      %p137 = por %p135, %p136
      %s138 = ssub.s32 %s15, %s22
      %p139 = scmp.eq.s32.totalorder %s138, 0
      %s141 = sadd.s32 %s140, 1
      %s142 = scalar_select %p139, %s140, %s141
      %p145 = pneg %p139
      %p146 = scmp.eq.s32.totalorder %s15, 1
      %p147 = por %p145, %p146
      %p148 = scmp.ne.s32.totalorder %s140, %s143
      %p149 = scmp.eq.s32.totalorder %s15, 0
      %p150 = por %p148, %p149
      %p151 = scmp.ne.s32.totalorder %s140, %s143
      %p152 = scmp.eq.s32.totalorder %s20, 1
      %p153 = por %p151, %p152
      %p154 = scmp.ne.s32.totalorder %s143, %s144
      %p155 = scmp.eq.s32.totalorder %s20, 0
      %p156 = por %p154, %p155
      %p157 = scmp.ne.s32.totalorder %s143, %s144
      %p158 = scmp.eq.s32.totalorder %s21, 1
      %p159 = por %p157, %p158
      %p161 = scmp.ne.s32.totalorder %s144, %s160
      %p162 = scmp.eq.s32.totalorder %s21, 0
      %p163 = por %p161, %p162
      %p164 = scmp.le.s32.totalorder 1, %s15
      %p165 = scmp.lt.s32.totalorder %s15, 3
      %p166 = pnand %p164, %p165
      %p167 = pneg %p166
      // Predicated region
      $region9: #{speaker2dubber_forward.1} parent=5 // pred_check
        _
      $region10: #{speaker2dubber_forward.1} parent=5 // pred_check_branch
        %169 = sbr.rel (%p166) target = $region12
      $region11: #{speaker2dubber_forward.1} parent=5 // pred_region
        %s170 = ssub.s32 %s15, 1
        // Predicated region
        $region13: #{speaker2dubber_forward.1} parent=11 // pred_check
          %p171 = pneg %p62
        $region14: #{speaker2dubber_forward.1} parent=11 // pred_check_branch
          %173 = sbr.rel (%p171) target = $region16
        $region15: #{speaker2dubber_forward.1} parent=11 // pred_region
          _
        $region16: #{speaker2dubber_forward.1} parent=11 // pred_fallthru
          _
        // Predicated region
        $region17: #{speaker2dubber_forward.1} parent=11 // pred_check
          %p174 = pneg %p83
        $region18: #{speaker2dubber_forward.1} parent=11 // pred_check_branch
          %176 = sbr.rel (%p174) target = $region20
        $region19: #{speaker2dubber_forward.1} parent=11 // pred_region
          _
        $region20: #{speaker2dubber_forward.1} parent=11 // pred_fallthru
          _
        // Predicated region
        $region21: #{speaker2dubber_forward.1} parent=11 // pred_check
          %p177 = pneg %p104
        $region22: #{speaker2dubber_forward.1} parent=11 // pred_check_branch
          %179 = sbr.rel (%p177) target = $region24
        $region23: #{speaker2dubber_forward.1} parent=11 // pred_region
          _
        $region24: #{speaker2dubber_forward.1} parent=11 // pred_fallthru
          _
      $region12: #{speaker2dubber_forward.1} parent=5 // pred_fallthru
        _
      %p180 = scmp.lt.s32.totalorder %s15, 2
      // Predicated region
      $region25: #{speaker2dubber_forward.1} parent=5 // pred_check
        %p181 = pneg %p180
      $region26: #{speaker2dubber_forward.1} parent=5 // pred_check_branch
        %183 = sbr.rel (%p181) target = $region28
      $region27: #{speaker2dubber_forward.1} parent=5 // pred_region
        // Predicated region
        $region29: #{speaker2dubber_forward.1} parent=27 // pred_check
          %p184 = pneg %p35
        $region30: #{speaker2dubber_forward.1} parent=27 // pred_check_branch
          %186 = sbr.rel (%p184) target = $region32
        $region31: #{speaker2dubber_forward.1} parent=27 // pred_region
          %s187 = smul.u32 2, %s15
          %p188 = scmp.lt.s32.totalorder %s187, 3
          %s189 = scalar_select %p188, %s187, 3
          %s190 = smul.addr %s189, 2
          %s191 = smul.addr %s190, 8
          %s192 = scalar_lea.vmem %s0, %s191
          %s193 = smul.u32 2, %s15
        $region32: #{speaker2dubber_forward.1} parent=27 // pred_fallthru
          _
      $region28: #{speaker2dubber_forward.1} parent=5 // pred_fallthru
        _
      %p194 = scmp.le.s32.totalorder 1, %s15
      %p195 = scmp.lt.s32.totalorder %s15, 3
      %p196 = pnand %p194, %p195
      %p197 = pneg %p196
      // Predicated region
      $region33: #{speaker2dubber_forward.1} parent=5 // pred_check
        _
      $region34: #{speaker2dubber_forward.1} parent=5 // pred_check_branch
        %199 = sbr.rel (%p196) target = $region36
      $region35: #{speaker2dubber_forward.1} parent=5 // pred_region
        %s200 = ssub.s32 %s15, 1
        %s201 = smul.u32 2, %s20
        %p202 = scmp.lt.s32.totalorder %s201, 3
        %s203 = scalar_select %p202, %s201, 3
        %s204 = smul.addr %s203, 2
        %s205 = smul.addr %s204, 8
        %s206 = scalar_lea.vmem %s0, %s205
        %p207 = pneg %p41
        %p208 = pneg %p38
        %p209 = pneg %p62
        %p210 = pneg %p59
        %p211 = pneg %p83
        %p212 = pneg %p80
        %p213 = pneg %p104
        %p214 = pneg %p101
        %p215 = pneg %p130
        %p216 = pneg %p127
        %s217 = sand.u32 %s117, 1
        %s218 = scalar_lea.sflag [#allocation3], %s217
        %s219 = sand.u32 %s117, 1
        %s220 = smul.addr %s219, 16
        %s221 = scalar_lea.vmem [#allocation2], %s220
        %p222 = pneg %p156
        %p223 = pneg %p153
        %s224 = smul.u32 2, %s20
        %p225 = scmp.lt.s32.totalorder %s224, 3
        %s226 = scalar_select %p225, %s224, 3
        %s227 = smul.addr %s226, 3
        %s228 = smul.addr %s227, 4
        %s229 = scalar_lea.vmem %s5, %s228
        %s230 = smul.u32 2, %s20
        %p231 = scmp.lt.s32.totalorder %s230, 3
        %s232 = scalar_select %p231, %s230, 3
        %s233 = smul.addr %s232, 2
        %s234 = smul.addr %s233, 8
        %s235 = scalar_lea.vmem %s0, %s234
        %s236 = smul.u32 2, %s20
        %s237 = smul.u32 2, %s20
        %s238 = smul.u32 2, %s20
        %p239 = scmp.lt.s32.totalorder %s238, 3
        %s240 = scalar_select %p239, %s238, 3
        %s241 = smul.addr %s240, 3
        %s242 = smul.addr %s241, 4
        %s243 = scalar_lea.vmem %s5, %s242
        %s244 = smul.u32 2, %s20
        %v245 = vld [vmem:[%s235] sm:$0xff]
        %v246 = vld [vmem:[%s235 + $0x8] sm:$0xff]
        %v247 = vld [vmem:[%s235 + $0x10] sm:$0xff]
        %v248 = vld [vmem:[%s235 + $0x18] sm:$0xff]
        %v249 = vpack.c.bf16 %v247, %v245
        %v250 = vpack.c.bf16 %v248, %v246
        %v251 = vld [vmem:[%s1] sm:$0xff]
        %v252 = vld [vmem:[%s1 + $0x8] sm:$0xff]
        %v253 = vld [vmem:[%s1 + $0x10] sm:$0xff]
        %v254 = vld [vmem:[%s1 + $0x18] sm:$0xff]
        %v255 = vld [vmem:[%s1 + $0x20] sm:$0xff]
        %v256 = vld [vmem:[%s1 + $0x28] sm:$0xff]
        %v257 = vld [vmem:[%s1 + $0x30] sm:$0xff]
        %v258 = vld [vmem:[%s1 + $0x38] sm:$0xff]
        %v259 = vld [vmem:[%s1 + $0x40] sm:$0xff]
        %v260 = vld [vmem:[%s1 + $0x48] sm:$0xff]
        %v261 = vld [vmem:[%s1 + $0x50] sm:$0xff]
        %v262 = vld [vmem:[%s1 + $0x58] sm:$0xff]
        %v263 = vld [vmem:[%s1 + $0x60] sm:$0xff]
        %v264 = vld [vmem:[%s1 + $0x68] sm:$0xff]
        %v265 = vld [vmem:[%s1 + $0x70] sm:$0xff]
        %v266 = vld [vmem:[%s1 + $0x78] sm:$0xff]
        %v267 = vld [vmem:[%s1 + $0x80] sm:$0xff]
        %v268 = vld [vmem:[%s1 + $0x88] sm:$0xff]
        %v269 = vld [vmem:[%s1 + $0x90] sm:$0xff]
        %v270 = vld [vmem:[%s1 + $0x98] sm:$0xff]
        %v271 = vld [vmem:[%s1 + $0xa0] sm:$0xff]
        %v272 = vld [vmem:[%s1 + $0xa8] sm:$0xff]
        %v273 = vld [vmem:[%s1 + $0xb0] sm:$0xff]
        %v274 = vld [vmem:[%s1 + $0xb8] sm:$0xff]
        %v275 = vld [vmem:[%s1 + $0xc0] sm:$0xff]
        %v276 = vld [vmem:[%s1 + $0xc8] sm:$0xff]
        %v277 = vld [vmem:[%s1 + $0xd0] sm:$0xff]
        %v278 = vld [vmem:[%s1 + $0xd8] sm:$0xff]
        %v279 = vld [vmem:[%s1 + $0xe0] sm:$0xff]
        %v280 = vld [vmem:[%s1 + $0xe8] sm:$0xff]
        %v281 = vld [vmem:[%s1 + $0xf0] sm:$0xff]
        %v282 = vld [vmem:[%s1 + $0xf8] sm:$0xff]
        %v315 = vunpack.c.l.b16 %v251
        %v316 = vunpack.c.h.b16 %v251
        %v317 = vunpack.c.l.b16 %v252
        %v318 = vunpack.c.h.b16 %v252
        %v319 = vunpack.c.l.b16 %v253
        %v320 = vunpack.c.h.b16 %v253
        %v321 = vunpack.c.l.b16 %v254
        %v322 = vunpack.c.h.b16 %v254
        %v323 = vunpack.c.l.b16 %v255
        %v324 = vunpack.c.h.b16 %v255
        %v325 = vunpack.c.l.b16 %v256
        %v326 = vunpack.c.h.b16 %v256
        %v327 = vunpack.c.l.b16 %v257
        %v328 = vunpack.c.h.b16 %v257
        %v329 = vunpack.c.l.b16 %v258
        %v330 = vunpack.c.h.b16 %v258
        %v331 = vunpack.c.l.b16 %v259
        %v332 = vunpack.c.h.b16 %v259
        %v333 = vunpack.c.l.b16 %v260
        %v334 = vunpack.c.h.b16 %v260
        %v335 = vunpack.c.l.b16 %v261
        %v336 = vunpack.c.h.b16 %v261
        %v337 = vunpack.c.l.b16 %v262
        %v338 = vunpack.c.h.b16 %v262
        %v339 = vunpack.c.l.b16 %v263
        %v340 = vunpack.c.h.b16 %v263
        %v341 = vunpack.c.l.b16 %v264
        %v342 = vunpack.c.h.b16 %v264
        %v343 = vunpack.c.l.b16 %v265
        %v344 = vunpack.c.h.b16 %v265
        %v345 = vunpack.c.l.b16 %v266
        %v346 = vunpack.c.h.b16 %v266
        %v347 = vunpack.c.l.b16 %v267
        %v348 = vunpack.c.h.b16 %v267
        %v349 = vunpack.c.l.b16 %v268
        %v350 = vunpack.c.h.b16 %v268
        %v351 = vunpack.c.l.b16 %v269
        %v352 = vunpack.c.h.b16 %v269
        %v353 = vunpack.c.l.b16 %v270
        %v354 = vunpack.c.h.b16 %v270
        %v355 = vunpack.c.l.b16 %v271
        %v356 = vunpack.c.h.b16 %v271
        %v357 = vunpack.c.l.b16 %v272
        %v358 = vunpack.c.h.b16 %v272
        %v359 = vunpack.c.l.b16 %v273
        %v360 = vunpack.c.h.b16 %v273
        %v361 = vunpack.c.l.b16 %v274
        %v362 = vunpack.c.h.b16 %v274
        %v363 = vunpack.c.l.b16 %v275
        %v364 = vunpack.c.h.b16 %v275
        %v365 = vunpack.c.l.b16 %v276
        %v366 = vunpack.c.h.b16 %v276
        %v367 = vunpack.c.l.b16 %v277
        %v368 = vunpack.c.h.b16 %v277
        %v369 = vunpack.c.l.b16 %v278
        %v370 = vunpack.c.h.b16 %v278
        %v371 = vunpack.c.l.b16 %v279
        %v372 = vunpack.c.h.b16 %v279
        %v373 = vunpack.c.l.b16 %v280
        %v374 = vunpack.c.h.b16 %v280
        %v375 = vunpack.c.l.b16 %v281
        %v376 = vunpack.c.h.b16 %v281
        %v377 = vunpack.c.l.b16 %v282
        %v378 = vunpack.c.h.b16 %v282
        %v379 = vpack.c.b16 %v317, %v315
        %v380 = vpack.c.b16 %v318, %v316
        %v381 = vpack.c.b16 %v321, %v319
        %v382 = vpack.c.b16 %v322, %v320
        %v383 = vpack.c.b16 %v325, %v323
        %v384 = vpack.c.b16 %v326, %v324
        %v385 = vpack.c.b16 %v329, %v327
        %v386 = vpack.c.b16 %v330, %v328
        %v387 = vpack.c.b16 %v333, %v331
        %v388 = vpack.c.b16 %v334, %v332
        %v389 = vpack.c.b16 %v337, %v335
        %v390 = vpack.c.b16 %v338, %v336
        %v391 = vpack.c.b16 %v341, %v339
        %v392 = vpack.c.b16 %v342, %v340
        %v393 = vpack.c.b16 %v345, %v343
        %v394 = vpack.c.b16 %v346, %v344
        %v395 = vpack.c.b16 %v349, %v347
        %v396 = vpack.c.b16 %v350, %v348
        %v397 = vpack.c.b16 %v353, %v351
        %v398 = vpack.c.b16 %v354, %v352
        %v399 = vpack.c.b16 %v357, %v355
        %v400 = vpack.c.b16 %v358, %v356
        %v401 = vpack.c.b16 %v361, %v359
        %v402 = vpack.c.b16 %v362, %v360
        %v403 = vpack.c.b16 %v365, %v363
        %v404 = vpack.c.b16 %v366, %v364
        %v405 = vpack.c.b16 %v369, %v367
        %v406 = vpack.c.b16 %v370, %v368
        %v407 = vpack.c.b16 %v373, %v371
        %v408 = vpack.c.b16 %v374, %v372
        %v409 = vpack.c.b16 %v377, %v375
        %v410 = vpack.c.b16 %v378, %v376
        %443 = vmatpush.bf16.msra.mxu0 %v393
        %444 = vmatpush.bf16.msra.mxu0 %v391
        %445 = vmatpush.bf16.msra.mxu0 %v389
        %446 = vmatpush.bf16.msra.mxu0 %v387
        %447 = vmatpush.bf16.msra.mxu0 %v385
        %448 = vmatpush.bf16.msra.mxu0 %v383
        %449 = vmatpush.bf16.msra.mxu0 %v381
        %450 = vmatpush.bf16.msra.mxu0 %v379
        %451 = vmatmul.bf16.gmra.mxu0 %v249
        %v452 = vpop.f32.mrf.mxu0
        %v453 = vadd.f32 0.0, %v452
        %v454 = vpop.f32.mrf.mxu0
        %v455 = vadd.f32 0.0, %v454
        %456 = vdwg.mxu0
        %457 = vmatpush.bf16.msra.mxu0 %v409
        %458 = vmatpush.bf16.msra.mxu0 %v407
        %459 = vmatpush.bf16.msra.mxu0 %v405
        %460 = vmatpush.bf16.msra.mxu0 %v403
        %461 = vmatpush.bf16.msra.mxu0 %v401
        %462 = vmatpush.bf16.msra.mxu0 %v399
        %463 = vmatpush.bf16.msra.mxu0 %v397
        %464 = vmatpush.bf16.msra.mxu0 %v395
        %465 = vmatmul.bf16.gmra.mxu0 %v250
        %v466 = vpop.f32.mrf.mxu0
        %v467 = vadd.f32 %v453, %v466
        %v468 = vpop.f32.mrf.mxu0
        %v469 = vadd.f32 %v455, %v468
        %470 = vdwg.mxu0
        %471 = vmatpush.bf16.msra.mxu0 %v394
        %472 = vmatpush.bf16.msra.mxu0 %v392
        %473 = vmatpush.bf16.msra.mxu0 %v390
        %474 = vmatpush.bf16.msra.mxu0 %v388
        %475 = vmatpush.bf16.msra.mxu0 %v386
        %476 = vmatpush.bf16.msra.mxu0 %v384
        %477 = vmatpush.bf16.msra.mxu0 %v382
        %478 = vmatpush.bf16.msra.mxu0 %v380
        %479 = vmatmul.bf16.gmra.mxu0 %v249
        %v480 = vpop.f32.mrf.mxu0
        %v481 = vadd.f32 0.0, %v480
        %v482 = vpop.f32.mrf.mxu0
        %v483 = vadd.f32 0.0, %v482
        %484 = vdwg.mxu0
        %485 = vmatpush.bf16.msra.mxu0 %v410
        %486 = vmatpush.bf16.msra.mxu0 %v408
        %487 = vmatpush.bf16.msra.mxu0 %v406
        %488 = vmatpush.bf16.msra.mxu0 %v404
        %489 = vmatpush.bf16.msra.mxu0 %v402
        %490 = vmatpush.bf16.msra.mxu0 %v400
        %491 = vmatpush.bf16.msra.mxu0 %v398
        %492 = vmatpush.bf16.msra.mxu0 %v396
        %493 = vmatmul.bf16.gmra.mxu0 %v250
        %v494 = vpop.f32.mrf.mxu0
        %v495 = vadd.f32 %v481, %v494
        %v496 = vpop.f32.mrf.mxu0
        %v497 = vadd.f32 %v483, %v496
        %498 = vdwg.mxu0
        %v499 = vpack.c.bf16 %v495, %v467
        %v500 = vpack.c.bf16 %v497, %v469
        %501 = vst [vmem:[%s221] sm:$0xff] %v499
        %502 = vst [vmem:[%s221 + $0x8] sm:$0xff] %v500
        %v503 = vld [vmem:[%s2] sm:$0xff]
        %v504 = vld [vmem:[%s2 + $0x8] sm:$0xf]
        %v505 = vld [vmem:[%s2 + $0xc] sm:$0xff]
        %v506 = vld [vmem:[%s2 + $0x14] sm:$0xf]
        %v507 = vld [vmem:[%s2 + $0x18] sm:$0xff]
        %v508 = vld [vmem:[%s2 + $0x20] sm:$0xf]
        %v509 = vld [vmem:[%s2 + $0x24] sm:$0xff]
        %v510 = vld [vmem:[%s2 + $0x2c] sm:$0xf]
        %v511 = vld [vmem:[%s2 + $0x30] sm:$0xff]
        %v512 = vld [vmem:[%s2 + $0x38] sm:$0xf]
        %v513 = vld [vmem:[%s2 + $0x3c] sm:$0xff]
        %v514 = vld [vmem:[%s2 + $0x44] sm:$0xf]
        %v515 = vld [vmem:[%s2 + $0x48] sm:$0xff]
        %v516 = vld [vmem:[%s2 + $0x50] sm:$0xf]
        %v517 = vld [vmem:[%s2 + $0x54] sm:$0xff]
        %v518 = vld [vmem:[%s2 + $0x5c] sm:$0xf]
        %v519 = vld [vmem:[%s2 + $0x60] sm:$0xff]
        %v520 = vld [vmem:[%s2 + $0x68] sm:$0xf]
        %v521 = vld [vmem:[%s2 + $0x6c] sm:$0xff]
        %v522 = vld [vmem:[%s2 + $0x74] sm:$0xf]
        %v523 = vld [vmem:[%s2 + $0x78] sm:$0xff]
        %v524 = vld [vmem:[%s2 + $0x80] sm:$0xf]
        %v525 = vld [vmem:[%s2 + $0x84] sm:$0xff]
        %v526 = vld [vmem:[%s2 + $0x8c] sm:$0xf]
        %v527 = vld [vmem:[%s2 + $0x90] sm:$0xff]
        %v528 = vld [vmem:[%s2 + $0x98] sm:$0xf]
        %v529 = vld [vmem:[%s2 + $0x9c] sm:$0xff]
        %v530 = vld [vmem:[%s2 + $0xa4] sm:$0xf]
        %v531 = vld [vmem:[%s2 + $0xa8] sm:$0xff]
        %v532 = vld [vmem:[%s2 + $0xb0] sm:$0xf]
        %v533 = vld [vmem:[%s2 + $0xb4] sm:$0xff]
        %v534 = vld [vmem:[%s2 + $0xbc] sm:$0xf]
        %v535 = vld [vmem:[%s2 + $0xc0] sm:$0xff]
        %v536 = vld [vmem:[%s2 + $0xc8] sm:$0xf]
        %v537 = vld [vmem:[%s2 + $0xcc] sm:$0xff]
        %v538 = vld [vmem:[%s2 + $0xd4] sm:$0xf]
        %v539 = vld [vmem:[%s2 + $0xd8] sm:$0xff]
        %v540 = vld [vmem:[%s2 + $0xe0] sm:$0xf]
        %v541 = vld [vmem:[%s2 + $0xe4] sm:$0xff]
        %v542 = vld [vmem:[%s2 + $0xec] sm:$0xf]
        %v543 = vld [vmem:[%s2 + $0xf0] sm:$0xff]
        %v544 = vld [vmem:[%s2 + $0xf8] sm:$0xf]
        %v545 = vld [vmem:[%s2 + $0xfc] sm:$0xff]
        %v546 = vld [vmem:[%s2 + $0x104] sm:$0xf]
        %v547 = vld [vmem:[%s2 + $0x108] sm:$0xff]
        %v548 = vld [vmem:[%s2 + $0x110] sm:$0xf]
        %v549 = vld [vmem:[%s2 + $0x114] sm:$0xff]
        %v550 = vld [vmem:[%s2 + $0x11c] sm:$0xf]
        %v551 = vld [vmem:[%s2 + $0x120] sm:$0xff]
        %v552 = vld [vmem:[%s2 + $0x128] sm:$0xf]
        %v553 = vld [vmem:[%s2 + $0x12c] sm:$0xff]
        %v554 = vld [vmem:[%s2 + $0x134] sm:$0xf]
        %v555 = vld [vmem:[%s2 + $0x138] sm:$0xff]
        %v556 = vld [vmem:[%s2 + $0x140] sm:$0xf]
        %v557 = vld [vmem:[%s2 + $0x144] sm:$0xff]
        %v558 = vld [vmem:[%s2 + $0x14c] sm:$0xf]
        %v559 = vld [vmem:[%s2 + $0x150] sm:$0xff]
        %v560 = vld [vmem:[%s2 + $0x158] sm:$0xf]
        %v561 = vld [vmem:[%s2 + $0x15c] sm:$0xff]
        %v562 = vld [vmem:[%s2 + $0x164] sm:$0xf]
        %v563 = vld [vmem:[%s2 + $0x168] sm:$0xff]
        %v564 = vld [vmem:[%s2 + $0x170] sm:$0xf]
        %v565 = vld [vmem:[%s2 + $0x174] sm:$0xff]
        %v566 = vld [vmem:[%s2 + $0x17c] sm:$0xf]
        %v567 = vld [vmem:[%s3] sm:$0x7]
        %v569 = vperm.slane %v567, 0
        %v570 = vperm.slane %v567, 1
        %v571 = vperm.slane %v567, 2
        %v639 = vunpack.c.l.b16 %v503
        %v640 = vunpack.c.h.b16 %v503
        %v641 = vunpack.c.l.b16 %v504
        %v642 = vunpack.c.l.b16 %v505
        %v643 = vunpack.c.h.b16 %v505
        %v644 = vunpack.c.l.b16 %v506
        %v645 = vunpack.c.l.b16 %v507
        %v646 = vunpack.c.h.b16 %v507
        %v647 = vunpack.c.l.b16 %v508
        %v648 = vunpack.c.l.b16 %v509
        %v649 = vunpack.c.h.b16 %v509
        %v650 = vunpack.c.l.b16 %v510
        %v651 = vunpack.c.l.b16 %v511
        %v652 = vunpack.c.h.b16 %v511
        %v653 = vunpack.c.l.b16 %v512
        %v654 = vunpack.c.l.b16 %v513
        %v655 = vunpack.c.h.b16 %v513
        %v656 = vunpack.c.l.b16 %v514
        %v657 = vunpack.c.l.b16 %v515
        %v658 = vunpack.c.h.b16 %v515
        %v659 = vunpack.c.l.b16 %v516
        %v660 = vunpack.c.l.b16 %v517
        %v661 = vunpack.c.h.b16 %v517
        %v662 = vunpack.c.l.b16 %v518
        %v663 = vunpack.c.l.b16 %v519
        %v664 = vunpack.c.h.b16 %v519
        %v665 = vunpack.c.l.b16 %v520
        %v666 = vunpack.c.l.b16 %v521
        %v667 = vunpack.c.h.b16 %v521
        %v668 = vunpack.c.l.b16 %v522
        %v669 = vunpack.c.l.b16 %v523
        %v670 = vunpack.c.h.b16 %v523
        %v671 = vunpack.c.l.b16 %v524
        %v672 = vunpack.c.l.b16 %v525
        %v673 = vunpack.c.h.b16 %v525
        %v674 = vunpack.c.l.b16 %v526
        %v675 = vunpack.c.l.b16 %v527
        %v676 = vunpack.c.h.b16 %v527
        %v677 = vunpack.c.l.b16 %v528
        %v678 = vunpack.c.l.b16 %v529
        %v679 = vunpack.c.h.b16 %v529
        %v680 = vunpack.c.l.b16 %v530
        %v681 = vunpack.c.l.b16 %v531
        %v682 = vunpack.c.h.b16 %v531
        %v683 = vunpack.c.l.b16 %v532
        %v684 = vunpack.c.l.b16 %v533
        %v685 = vunpack.c.h.b16 %v533
        %v686 = vunpack.c.l.b16 %v534
        %v687 = vunpack.c.l.b16 %v535
        %v688 = vunpack.c.h.b16 %v535
        %v689 = vunpack.c.l.b16 %v536
        %v690 = vunpack.c.l.b16 %v537
        %v691 = vunpack.c.h.b16 %v537
        %v692 = vunpack.c.l.b16 %v538
        %v693 = vunpack.c.l.b16 %v539
        %v694 = vunpack.c.h.b16 %v539
        %v695 = vunpack.c.l.b16 %v540
        %v696 = vunpack.c.l.b16 %v541
        %v697 = vunpack.c.h.b16 %v541
        %v698 = vunpack.c.l.b16 %v542
        %v699 = vunpack.c.l.b16 %v543
        %v700 = vunpack.c.h.b16 %v543
        %v701 = vunpack.c.l.b16 %v544
        %v702 = vunpack.c.l.b16 %v545
        %v703 = vunpack.c.h.b16 %v545
        %v704 = vunpack.c.l.b16 %v546
        %v705 = vunpack.c.l.b16 %v547
        %v706 = vunpack.c.h.b16 %v547
        %v707 = vunpack.c.l.b16 %v548
        %v708 = vunpack.c.l.b16 %v549
        %v709 = vunpack.c.h.b16 %v549
        %v710 = vunpack.c.l.b16 %v550
        %v711 = vunpack.c.l.b16 %v551
        %v712 = vunpack.c.h.b16 %v551
        %v713 = vunpack.c.l.b16 %v552
        %v714 = vunpack.c.l.b16 %v553
        %v715 = vunpack.c.h.b16 %v553
        %v716 = vunpack.c.l.b16 %v554
        %v717 = vunpack.c.l.b16 %v555
        %v718 = vunpack.c.h.b16 %v555
        %v719 = vunpack.c.l.b16 %v556
        %v720 = vunpack.c.l.b16 %v557
        %v721 = vunpack.c.h.b16 %v557
        %v722 = vunpack.c.l.b16 %v558
        %v723 = vunpack.c.l.b16 %v559
        %v724 = vunpack.c.h.b16 %v559
        %v725 = vunpack.c.l.b16 %v560
        %v726 = vunpack.c.l.b16 %v561
        %v727 = vunpack.c.h.b16 %v561
        %v728 = vunpack.c.l.b16 %v562
        %v729 = vunpack.c.l.b16 %v563
        %v730 = vunpack.c.h.b16 %v563
        %v731 = vunpack.c.l.b16 %v564
        %v732 = vunpack.c.l.b16 %v565
        %v733 = vunpack.c.h.b16 %v565
        %v734 = vunpack.c.l.b16 %v566
        %v735 = vpack.c.b16 %v642, %v639
        %v736 = vpack.c.b16 %v643, %v640
        %v737 = vpack.c.b16 %v644, %v641
        %v738 = vpack.c.b16 %v648, %v645
        %v739 = vpack.c.b16 %v649, %v646
        %v740 = vpack.c.b16 %v650, %v647
        %v741 = vpack.c.b16 %v654, %v651
        %v742 = vpack.c.b16 %v655, %v652
        %v743 = vpack.c.b16 %v656, %v653
        %v744 = vpack.c.b16 %v660, %v657
        %v745 = vpack.c.b16 %v661, %v658
        %v746 = vpack.c.b16 %v662, %v659
        %v747 = vpack.c.b16 %v666, %v663
        %v748 = vpack.c.b16 %v667, %v664
        %v749 = vpack.c.b16 %v668, %v665
        %v750 = vpack.c.b16 %v672, %v669
        %v751 = vpack.c.b16 %v673, %v670
        %v752 = vpack.c.b16 %v674, %v671
        %v753 = vpack.c.b16 %v678, %v675
        %v754 = vpack.c.b16 %v679, %v676
        %v755 = vpack.c.b16 %v680, %v677
        %v756 = vpack.c.b16 %v684, %v681
        %v757 = vpack.c.b16 %v685, %v682
        %v758 = vpack.c.b16 %v686, %v683
        %v759 = vpack.c.b16 %v690, %v687
        %v760 = vpack.c.b16 %v691, %v688
        %v761 = vpack.c.b16 %v692, %v689
        %v762 = vpack.c.b16 %v696, %v693
        %v763 = vpack.c.b16 %v697, %v694
        %v764 = vpack.c.b16 %v698, %v695
        %v765 = vpack.c.b16 %v702, %v699
        %v766 = vpack.c.b16 %v703, %v700
        %v767 = vpack.c.b16 %v704, %v701
        %v768 = vpack.c.b16 %v708, %v705
        %v769 = vpack.c.b16 %v709, %v706
        %v770 = vpack.c.b16 %v710, %v707
        %v771 = vpack.c.b16 %v714, %v711
        %v772 = vpack.c.b16 %v715, %v712
        %v773 = vpack.c.b16 %v716, %v713
        %v774 = vpack.c.b16 %v720, %v717
        %v775 = vpack.c.b16 %v721, %v718
        %v776 = vpack.c.b16 %v722, %v719
        %v777 = vpack.c.b16 %v726, %v723
        %v778 = vpack.c.b16 %v727, %v724
        %v779 = vpack.c.b16 %v728, %v725
        %v780 = vpack.c.b16 %v732, %v729
        %v781 = vpack.c.b16 %v733, %v730
        %v782 = vpack.c.b16 %v734, %v731
        %831 = vmatpush.bf16.msra.mxu0 %v756
        %832 = vmatpush.bf16.msra.mxu0 %v753
        %833 = vmatpush.bf16.msra.mxu0 %v750
        %834 = vmatpush.bf16.msra.mxu0 %v747
        %835 = vmatpush.bf16.msra.mxu0 %v744
        %836 = vmatpush.bf16.msra.mxu0 %v741
        %837 = vmatpush.bf16.msra.mxu0 %v738
        %838 = vmatpush.bf16.msra.mxu0 %v735
        %839 = vmatmul.bf16.gmra.mxu0 %v249
        %v840 = vpop.f32.mrf.mxu0
        %v841 = vadd.f32 %v569, %v840
        %v842 = vpop.f32.mrf.mxu0
        %v843 = vadd.f32 %v569, %v842
        %844 = vdwg.mxu0
        %845 = vmatpush.bf16.msra.mxu0 %v780
        %846 = vmatpush.bf16.msra.mxu0 %v777
        %847 = vmatpush.bf16.msra.mxu0 %v774
        %848 = vmatpush.bf16.msra.mxu0 %v771
        %849 = vmatpush.bf16.msra.mxu0 %v768
        %850 = vmatpush.bf16.msra.mxu0 %v765
        %851 = vmatpush.bf16.msra.mxu0 %v762
        %852 = vmatpush.bf16.msra.mxu0 %v759
        %853 = vmatmul.bf16.gmra.mxu0 %v250
        %v854 = vpop.f32.mrf.mxu0
        %v855 = vadd.f32 %v841, %v854
        %v856 = vpop.f32.mrf.mxu0
        %v857 = vadd.f32 %v843, %v856
        %858 = vdwg.mxu0
        %859 = vmatpush.bf16.msra.mxu0 %v757
        %860 = vmatpush.bf16.msra.mxu0 %v754
        %861 = vmatpush.bf16.msra.mxu0 %v751
        %862 = vmatpush.bf16.msra.mxu0 %v748
        %863 = vmatpush.bf16.msra.mxu0 %v745
        %864 = vmatpush.bf16.msra.mxu0 %v742
        %865 = vmatpush.bf16.msra.mxu0 %v739
        %866 = vmatpush.bf16.msra.mxu0 %v736
        %867 = vmatmul.bf16.gmra.mxu0 %v249
        %v868 = vpop.f32.mrf.mxu0
        %v869 = vadd.f32 %v570, %v868
        %v870 = vpop.f32.mrf.mxu0
        %v871 = vadd.f32 %v570, %v870
        %872 = vdwg.mxu0
        %873 = vmatpush.bf16.msra.mxu0 %v781
        %874 = vmatpush.bf16.msra.mxu0 %v778
        %875 = vmatpush.bf16.msra.mxu0 %v775
        %876 = vmatpush.bf16.msra.mxu0 %v772
        %877 = vmatpush.bf16.msra.mxu0 %v769
        %878 = vmatpush.bf16.msra.mxu0 %v766
        %879 = vmatpush.bf16.msra.mxu0 %v763
        %880 = vmatpush.bf16.msra.mxu0 %v760
        %881 = vmatmul.bf16.gmra.mxu0 %v250
        %v882 = vpop.f32.mrf.mxu0
        %v883 = vadd.f32 %v869, %v882
        %v884 = vpop.f32.mrf.mxu0
        %v885 = vadd.f32 %v871, %v884
        %886 = vdwg.mxu0
        %887 = vmatpush.bf16.msra.mxu0 %v758
        %888 = vmatpush.bf16.msra.mxu0 %v755
        %889 = vmatpush.bf16.msra.mxu0 %v752
        %890 = vmatpush.bf16.msra.mxu0 %v749
        %891 = vmatpush.bf16.msra.mxu0 %v746
        %892 = vmatpush.bf16.msra.mxu0 %v743
        %893 = vmatpush.bf16.msra.mxu0 %v740
        %894 = vmatpush.bf16.msra.mxu0 %v737
        %895 = vmatmul.bf16.gmra.mxu0 %v249
        %v896 = vpop.f32.mrf.mxu0
        %v897 = vadd.f32 %v571, %v896
        %v898 = vpop.f32.mrf.mxu0
        %v899 = vadd.f32 %v571, %v898
        %900 = vdwg.mxu0
        %901 = vmatpush.bf16.msra.mxu0 %v782
        %902 = vmatpush.bf16.msra.mxu0 %v779
        %903 = vmatpush.bf16.msra.mxu0 %v776
        %904 = vmatpush.bf16.msra.mxu0 %v773
        %905 = vmatpush.bf16.msra.mxu0 %v770
        %906 = vmatpush.bf16.msra.mxu0 %v767
        %907 = vmatpush.bf16.msra.mxu0 %v764
        %908 = vmatpush.bf16.msra.mxu0 %v761
        %909 = vmatmul.bf16.gmra.mxu0 %v250
        %v910 = vpop.f32.mrf.mxu0
        %v911 = vadd.f32 %v897, %v910
        %v912 = vpop.f32.mrf.mxu0
        %v913 = vadd.f32 %v899, %v912
        %914 = vdwg.mxu0
        %v915 = vpack.c.bf16 %v883, %v855
        %v916 = vpack.c.bf16 %v911, %v911
        %v917 = vpack.c.bf16 %v885, %v857
        %v918 = vpack.c.bf16 %v913, %v913
        %919 = vst [vmem:[%s243] sm:$0xff] %v915
        %920 = vst [vmem:[%s243 + $0x8] sm:$0xf] %v916
        %921 = vst [vmem:[%s243 + $0xc] sm:$0xff] %v917
        %922 = vst [vmem:[%s243 + $0x14] sm:$0xf] %v918
        %s923 = sand.u32 %s117, 1
        %s924 = scalar_lea.sflag [#allocation3], %s923
        %s925 = sand.u32 %s117, 1
        %s926 = smul.addr %s925, 16
        %s927 = scalar_lea.vmem [#allocation2], %s926
        %s928 = smul.u32 2, %s20
        %p929 = scmp.lt.s32.totalorder %s928, 3
        %s930 = scalar_select %p929, %s928, 3
        %s931 = smul.addr %s930, 3
        %s932 = smul.addr %s931, 4
        %s933 = scalar_lea.vmem %s5, %s932
        // Predicated region
        $region37: #{speaker2dubber_forward.1} parent=35 // pred_check
          %p934 = pneg %p127
        $region38: #{speaker2dubber_forward.1} parent=35 // pred_check_branch
          %936 = sbr.rel (%p934) target = $region40
        $region39: #{speaker2dubber_forward.1} parent=35 // pred_region
          %s937 = smul.u32 2, %s20
          %939 = vsyncadd %s924, 0
          %s940 = smul.addr %s937, 2
          %s941 = smul.addr %s940, 4
          %s942 = scalar_lea.hbm %s4, %s941
          %s943 = sshll.u32 %s927, 4
          %s944 = int_to_ptr.vmem [resolvable:$true] %s943
          %s945 = sshll.u32 %s942, 4
          %s946 = int_to_ptr.hbm [resolvable:$true] %s945
          %951 = dma.vmem_to_hbm [thread:$0]  %s944, 256, %s946, %s924, 128, 128, 8
        $region40: #{speaker2dubber_forward.1} parent=35 // pred_fallthru
          _
        // Predicated region
        $region41: #{speaker2dubber_forward.1} parent=35 // pred_check
          %p952 = pneg %p153
        $region42: #{speaker2dubber_forward.1} parent=35 // pred_check_branch
          %954 = sbr.rel (%p952) target = $region44
        $region43: #{speaker2dubber_forward.1} parent=35 // pred_region
          %s955 = smul.u32 2, %s20
        $region44: #{speaker2dubber_forward.1} parent=35 // pred_fallthru
          _
      $region36: #{speaker2dubber_forward.1} parent=5 // pred_fallthru
        _
      %p956 = scmp.le.s32.totalorder 2, %s15
      // Predicated region
      $region45: #{speaker2dubber_forward.1} parent=5 // pred_check
        %p957 = pneg %p956
      $region46: #{speaker2dubber_forward.1} parent=5 // pred_check_branch
        %959 = sbr.rel (%p957) target = $region48
      $region47: #{speaker2dubber_forward.1} parent=5 // pred_region
        %s960 = ssub.s32 %s15, 2
        // Predicated region
        $region49: #{speaker2dubber_forward.1} parent=47 // pred_check
          %p961 = pneg %p133
        $region50: #{speaker2dubber_forward.1} parent=47 // pred_check_branch
          %963 = sbr.rel (%p961) target = $region52
        $region51: #{speaker2dubber_forward.1} parent=47 // pred_region
          %s964 = sand.u32 %s118, 1
          %s965 = scalar_lea.sflag [#allocation3], %s964
          %s966 = sand.u32 %s118, 1
          %s967 = smul.addr %s966, 16
          %s968 = scalar_lea.vmem [#allocation2], %s967
          %970 = dma.done %s965, 256
        $region52: #{speaker2dubber_forward.1} parent=47 // pred_fallthru
          _
        // Predicated region
        $region53: #{speaker2dubber_forward.1} parent=47 // pred_check
          %p971 = pneg %p159
        $region54: #{speaker2dubber_forward.1} parent=47 // pred_check_branch
          %973 = sbr.rel (%p971) target = $region56
        $region55: #{speaker2dubber_forward.1} parent=47 // pred_region
          %s974 = smul.u32 2, %s21
          %p975 = scmp.lt.s32.totalorder %s974, 3
          %s976 = scalar_select %p975, %s974, 3
          %s977 = smul.addr %s976, 3
          %s978 = smul.addr %s977, 4
          %s979 = scalar_lea.vmem %s5, %s978
        $region56: #{speaker2dubber_forward.1} parent=47 // pred_fallthru
          _
      $region48: #{speaker2dubber_forward.1} parent=5 // pred_fallthru
        _
    $region6: #{speaker2dubber_forward.1} parent=1 // loop_footer
      %s19 = sadd.s32 1, %s15
    $region7: #{speaker2dubber_forward.1} parent=1 // loop_footer_branch
      %14 = sbr.rel target = $region3
    $region8: #{speaker2dubber_forward.1} parent=1 // loop_exit
      _
    %980 = vsyncpa [#allocation3], 1
    %s981 = scalar_lea.sflag [#allocation3], 1
    %982 = vsyncpa %s981, 1

</llo_original>
